<compile_context>
chip_gen: v5e
topology: v5e:2x2
jax: 0.10.0
libtpu: 0.0.40
codegen_flags: <defaults>
</compile_context>

<pallas_src>
import math

import jax
import jax.numpy as jnp
from jax.experimental import pallas as pl
from jax.experimental.pallas import tpu as pltpu


def make_positional_encoding_buffer(d_model: int,
                                    max_seq_len: int = 5000,
                                    dtype=jnp.float32) -> jnp.ndarray:
    """Equivalent of PositionalEncoding.__init__'s `pe` buffer (without the
    leading unsqueeze(0)); computed in f32, stored in the activation dtype."""
    if d_model % 2 != 0:
        # Same limitation as the PyTorch reference (its .set would mismatch).
        raise ValueError(f"d_model must be even, got {d_model}")
    position = jnp.arange(max_seq_len, dtype=jnp.float32)[:, None]              # (L, 1)
    div_term = jnp.exp(jnp.arange(0, d_model, 2, dtype=jnp.float32)
                       * (-math.log(10000.0) / d_model))                        # (D/2,)
    angles = position * div_term                                                # (L, D/2)
    # Interleave sin/cos -> columns [sin0, cos0, sin1, cos1, ...] == 0::2 / 1::2.
    pe = jnp.stack([jnp.sin(angles), jnp.cos(angles)], axis=-1)                 # (L, D/2, 2)
    pe = pe.reshape(max_seq_len, d_model)
    return pe.astype(dtype)


def _posenc_add_kernel(x_ref, pe_ref, o_ref):
    # x block: (TB, TC); pe block: (1, TC) -> sublane broadcast add (VPU only).
    o_ref[...] = x_ref[...] + pe_ref[...]


def _choose_tiles(b: int, cols: int, itemsize: int):
    """Pick (TB, TC) so each x block is ~1 MiB and blocks satisfy the (8,128)
    divisibility rule (or equal the full array dim)."""
    target_elems = (1 << 20) // itemsize          # ~1 MiB per x block
    tb = b if b <= 8 else 8                       # full (small) batch, or 8-row blocks
    if cols <= 128:
        tc = cols                                 # full last dim (allowed if < 128)
    else:
        tc = max(128, (target_elems // tb) // 128 * 128)
        if tc >= cols:
            tc = cols                             # whole row fits in the budget
    return tb, tc


def positional_encoding_forward(x: jnp.ndarray, pe_buffer: jnp.ndarray) -> jnp.ndarray:
    """x: (B, S, D); returns x + pe[:S] with x's shape and dtype."""
    b, s, d = x.shape
    max_len, d_pe = pe_buffer.shape
    if d_pe != d:
        raise ValueError(f"pe buffer d_model {d_pe} != input d_model {d}")
    if s > max_len:
        raise ValueError(f"seq_len {s} exceeds max_seq_len {max_len}")

    # Static slice of the precomputed buffer + cast to the activation dtype.
    pe = pe_buffer[:s, :].astype(x.dtype)

    # Lane-dense flattened layout: (B, S*D) activations, (1, S*D) pe.
    cols = s * d
    x2d = x.reshape(b, cols)
    pe2d = pe.reshape(1, cols)

    tb, tc = _choose_tiles(b, cols, jnp.dtype(x.dtype).itemsize)
    grid = (pl.cdiv(cols, tc), pl.cdiv(b, tb))    # batch innermost -> pe tile resident

    out2d = pl.pallas_call(
        _posenc_add_kernel,
        out_shape=jax.ShapeDtypeStruct((b, cols), x.dtype),
        grid=grid,
        in_specs=[
            pl.BlockSpec((tb, tc), lambda ci, bi: (bi, ci)),   # x
            pl.BlockSpec((1, tc), lambda ci, bi: (0, ci)),     # pe (constant over bi)
        ],
        out_specs=pl.BlockSpec((tb, tc), lambda ci, bi: (bi, ci)),
        input_output_aliases={0: 0},              # write result into x's buffer
        compiler_params=pltpu.CompilerParams(
            dimension_semantics=("parallel", "parallel")),
    )(x2d, pe2d)
    return out2d.reshape(b, s, d)


if __name__ == "__main__":
    # Small shapes consistent with the module: batch=2, seq=8, d_model=32.
    B, S, D = 2, 8, 32
    MAX_SEQ_LEN = 64   # module parameter (default 5000); rows identical for pos < max

    key = jax.random.PRNGKey(0)
    x = jax.random.normal(key, (B, S, D), dtype=jnp.float32)
    pe_buffer = make_positional_encoding_buffer(D, MAX_SEQ_LEN, dtype=x.dtype)

    # Pure-JAX reference of the PyTorch forward, computed BEFORE x is donated.
    ref = jax.block_until_ready(x + pe_buffer[:S][None, :, :])

    fwd = jax.jit(positional_encoding_forward, donate_argnums=(0,))
    out = fwd(x, pe_buffer)
    out = jax.block_until_ready(out)

    assert out.shape == (B, S, D) and out.dtype == jnp.float32
    assert bool(jnp.all(jnp.isfinite(out)))
    assert bool(jnp.allclose(out, ref, rtol=1e-6, atol=1e-6))

    print("KERNEL_OK")
</pallas_src>

<mosaic_0001>
module attributes {stable_mosaic.version = 11 : i64} {
  func.func @_posenc_add_kernel(%arg0: i32, %arg1: i32, %arg2: memref<2x256xf32, #tpu.memory_space<vmem>>, %arg3: memref<1x256xf32, #tpu.memory_space<vmem>>, %arg4: memref<2x256xf32, #tpu.memory_space<vmem>>) attributes {dimension_semantics = [#tpu.dimension_semantics<parallel>, #tpu.dimension_semantics<parallel>], iteration_bounds = array<i64: 1, 1>, scalar_prefetch = 0 : i64, scratch_operands = 0 : i64, tpu.core_type = #tpu.core_type<tc>, window_params = [{transform_indices = @transform_0, window_bounds = array<i64: 2, 256>}, {transform_indices = @transform_1, window_bounds = array<i64: 1, 256>}, {transform_indices = @transform_2, window_bounds = array<i64: 2, 256>}]} {
    %c0 = arith.constant 0 : index
    %c0_0 = arith.constant 0 : index
    %0 = vector.load %arg2[%c0, %c0_0] : memref<2x256xf32, #tpu.memory_space<vmem>>, vector<2x256xf32>
    %c0_1 = arith.constant 0 : index
    %c0_2 = arith.constant 0 : index
    %1 = vector.load %arg3[%c0_1, %c0_2] : memref<1x256xf32, #tpu.memory_space<vmem>>, vector<1x256xf32>
    %2 = vector.broadcast %1 : vector<1x256xf32> to vector<2x256xf32>
    %3 = arith.addf %0, %2 : vector<2x256xf32>
    %c0_3 = arith.constant 0 : index
    %c0_4 = arith.constant 0 : index
    %4 = vector.load %arg4[%c0_3, %c0_4] : memref<2x256xf32, #tpu.memory_space<vmem>>, vector<2x256xf32>
    tpu.vector_store %arg4[%c0_3, %c0_4], %3 {strides = array<i32>} : memref<2x256xf32, #tpu.memory_space<vmem>>, vector<2x256xf32>,
    return
  }
  func.func @transform_0(%arg0: i32, %arg1: i32) -> (i32, i32) {
    %c0_i32 = arith.constant 0 : i32
    return %arg1, %arg0 : i32, i32
  }
  func.func @transform_1(%arg0: i32, %arg1: i32) -> (i32, i32) {
    %c0_i32 = arith.constant 0 : i32
    %c0_i32_0 = arith.constant 0 : i32
    return %c0_i32, %arg0 : i32, i32
  }
  func.func @transform_2(%arg0: i32, %arg1: i32) -> (i32, i32) {
    %c0_i32 = arith.constant 0 : i32
    return %arg1, %arg0 : i32, i32
  }
}

</mosaic_0001>

<llo_original>
// kernel: positional_encoding_forward.1
$region0: #{positional_encoding_forward.1}
  #allocation0 [shape = 'u32[]', space=smem, size = 0x4, offset = 0x4, fixed_abs, tag = 'smem constant byte address 0x4 - core index']
  #allocation1 [shape = 'u32[72,128]{1,0:T(1,128)}', space=vmem, size = 0x9000, scoped, tag = 'internal scratch']
  %s0 = inlined_call_operand.vmem [shape: f32[2,256], index: 0, kind: input, shape index: {}, may-alias: {0,2}]
  %s1 = inlined_call_operand.vmem [shape: f32[1,256], index: 1, kind: input, shape index: {}]
  %s2 = inlined_call_operand.vmem [shape: f32[2,256], index: 2, kind: output, shape index: {}, may-alias: {0,2}]
  %s3 = sld [smem:[#allocation0]]
  $region18: #{positional_encoding_forward.1} parent=0
    _
  %s5 = ssub.s32 1, %s3
  %s6 = scalar_select 0, %s5, %s3
  // Predicated region
  $region2: #{positional_encoding_forward.1} parent=0 // pred_check
    _
  $region3: #{positional_encoding_forward.1} parent=0 // pred_check_branch
    %8 = sbr.rel (0) target = $region5
  $region4: #{positional_encoding_forward.1} parent=0 // pred_region
    _
  $region5: #{positional_encoding_forward.1} parent=0 // pred_fallthru
    _
  // Predicated region
  $region6: #{positional_encoding_forward.1} parent=0 // pred_check
    _
  $region7: #{positional_encoding_forward.1} parent=0 // pred_check_branch
    %10 = sbr.rel (0) target = $region9
  $region8: #{positional_encoding_forward.1} parent=0 // pred_region
    _
  $region9: #{positional_encoding_forward.1} parent=0 // pred_fallthru
    _
  %v11 = vld [vmem:[%s0] sm:$0xf]
  %v12 = vld [vmem:[%s1] sm:$0x3]
  %v14 = vperm.slane %v12, 0
  %v15 = vperm.slane %v12, 1
  %v16 = vrot.slane %v15, 6
  %vm17 = vcmask 1041408
  %v18 = vsel %vm17, %v14, %v16
  %v20 = vadd.f32 %v11, %v18
  %21 = vst [vmem:[%s2] sm:$0xf] %v20
  // Predicated region
  $region10: #{positional_encoding_forward.1} parent=0 // pred_check
    _
  $region11: #{positional_encoding_forward.1} parent=0 // pred_check_branch
    %23 = sbr.rel (0) target = $region13
  $region12: #{positional_encoding_forward.1} parent=0 // pred_region
    _
  $region13: #{positional_encoding_forward.1} parent=0 // pred_fallthru
    _
  // Predicated region
  $region14: #{positional_encoding_forward.1} parent=0 // pred_check
    _
  $region15: #{positional_encoding_forward.1} parent=0 // pred_check_branch
    %25 = sbr.rel (0) target = $region17
  $region16: #{positional_encoding_forward.1} parent=0 // pred_region
    _
  $region17: #{positional_encoding_forward.1} parent=0 // pred_fallthru
    _

</llo_original>
